<compile_context>
chip_gen: v6e
topology: v6e:2x2x1
jax: 0.10.0
libtpu: 0.0.40
codegen_flags: <defaults>
</compile_context>

<pallas_src>
import math

import jax
import jax.numpy as jnp
import numpy as np
from jax.experimental import pallas as pl
from jax.experimental.pallas import tpu as pltpu

_LANES = 128
_BLOCK_ROWS = 512          # multiple of 32 -> valid for f32/bf16/int8 blocks

_SMEM_SPEC = pl.BlockSpec(memory_space=pltpu.MemorySpace.SMEM)


def _round_up(x, m):
    return (x + m - 1) // m * m


def _layout(n, row_multiple):
    """Static (rows_padded, block_rows) for a flat length-n stream."""
    rows = -(-n // _LANES)
    if rows <= _BLOCK_ROWS:
        rows_padded = _round_up(rows, row_multiple)
        block_rows = rows_padded
    else:
        rows_padded = _round_up(rows, _BLOCK_ROWS)
        block_rows = _BLOCK_ROWS
    return rows_padded, block_rows


def _prep(flat, rows_padded):
    """Reshape a flat vector to lane-dense (rows_padded, 128); pad only if needed."""
    n = flat.shape[0]
    need = rows_padded * _LANES
    if need != n:
        flat = jnp.pad(flat, (0, need - n))
    return flat.reshape(rows_padded, _LANES)


# ----------------------------------------------------------------------------
# Kernels
# ----------------------------------------------------------------------------
def _make_unmasked_kernel(n_valid, block_rows, has_pad):
    """BCE-with-logits mean over all elements.  No weight stream: the padded
    tail is excluded via a static-count compare; divide by n fused in-kernel."""
    block_elems = block_rows * _LANES

    def kernel(logit_ref, target_ref, out_ref):
        step = pl.program_id(0)

        @pl.when(step == 0)
        def _():
            out_ref[0] = 0.0

        x = logit_ref[...].astype(jnp.float32)
        t = target_ref[...].astype(jnp.float32)
        # stable softplus identity: max(x,0) - x*t + log1p(exp(-|x|))
        loss = jnp.maximum(x, 0.0) - x * t + jnp.log1p(jnp.exp(-jnp.abs(x)))

        if has_pad:
            r = jax.lax.broadcasted_iota(jnp.int32, loss.shape, 0)
            c = jax.lax.broadcasted_iota(jnp.int32, loss.shape, 1)
            local = r * _LANES + c
            limit = n_valid - step * block_elems     # >= block size except last step
            loss = jnp.where(local < limit, loss, 0.0)

        out_ref[0] += jnp.sum(loss)

        @pl.when(step == pl.num_programs(0) - 1)
        def _():
            out_ref[0] = out_ref[0] / n_valid        # exact divide, static count

    return kernel


def _bce_masked_kernel(logit_ref, target_ref, w_ref, out_ref, acc_ref):
    """Masked BCE mean: weighted sum / weight sum, divide fused in-kernel.
    Padding carries w == 0, so no extra validity mask is needed."""
    step = pl.program_id(0)

    @pl.when(step == 0)
    def _():
        acc_ref[0] = 0.0
        acc_ref[1] = 0.0

    x = logit_ref[...].astype(jnp.float32)
    t = target_ref[...].astype(jnp.float32)
    w = w_ref[...].astype(jnp.float32)               # int8 stream -> f32 in-kernel
    loss = jnp.maximum(x, 0.0) - x * t + jnp.log1p(jnp.exp(-jnp.abs(x)))
    acc_ref[0] += jnp.sum(loss * w)
    acc_ref[1] += jnp.sum(w)

    @pl.when(step == pl.num_programs(0) - 1)
    def _():
        out_ref[0] = acc_ref[0] / acc_ref[1]         # NaN for empty mask == torch


# ----------------------------------------------------------------------------
# pallas_call wrappers (all static decisions come from shapes -> trace time)
# ----------------------------------------------------------------------------
@jax.jit
def _bce_mean(logit, target):
    n = logit.size
    rows_padded, block_rows = _layout(n, 8)
    l2 = _prep(jnp.ravel(logit), rows_padded)        # native dtype, no upcast
    t2 = _prep(jnp.ravel(target), rows_padded)
    has_pad = rows_padded * _LANES != n
    grid = (rows_padded // block_rows,)

    out = pl.pallas_call(
        _make_unmasked_kernel(n, block_rows, has_pad),
        out_shape=jax.ShapeDtypeStruct((1,), jnp.float32),
        grid_spec=pltpu.PrefetchScalarGridSpec(
            num_scalar_prefetch=0,
            grid=grid,
            in_specs=[pl.BlockSpec((block_rows, _LANES), lambda i: (i, 0)),
                      pl.BlockSpec((block_rows, _LANES), lambda i: (i, 0))],
            out_specs=_SMEM_SPEC,
        ),
        compiler_params=pltpu.CompilerParams(dimension_semantics=("arbitrary",)),
    )(l2, t2)
    return out[0]


@jax.jit
def _bce_mean_masked(logit, target, mask):
    # PyTorch `logit[mask]`: boolean mask over the leading dims selects whole
    # trailing blocks -> equivalent weighted mean with the broadcast mask.
    mask = mask.astype(jnp.int8)
    mask = jnp.reshape(mask, mask.shape + (1,) * (logit.ndim - mask.ndim))
    mask = jnp.broadcast_to(mask, logit.shape)

    n = logit.size
    rows_padded, block_rows = _layout(n, 32)         # int8 stream -> 32-row multiple
    l2 = _prep(jnp.ravel(logit), rows_padded)
    t2 = _prep(jnp.ravel(target), rows_padded)
    w2 = _prep(jnp.ravel(mask), rows_padded)         # 1 B/elem weight stream
    grid = (rows_padded // block_rows,)

    out = pl.pallas_call(
        _bce_masked_kernel,
        out_shape=jax.ShapeDtypeStruct((1,), jnp.float32),
        grid_spec=pltpu.PrefetchScalarGridSpec(
            num_scalar_prefetch=0,
            grid=grid,
            in_specs=[pl.BlockSpec((block_rows, _LANES), lambda i: (i, 0)),
                      pl.BlockSpec((block_rows, _LANES), lambda i: (i, 0)),
                      pl.BlockSpec((block_rows, _LANES), lambda i: (i, 0))],
            out_specs=_SMEM_SPEC,
            scratch_shapes=[pltpu.SMEM((2,), jnp.float32)],
        ),
        compiler_params=pltpu.CompilerParams(dimension_semantics=("arbitrary",)),
    )(l2, t2, w2)
    return out[0]


class CrossEntropyLoss:
    """Forward-pass equivalent of the PyTorch module wrapping BCEWithLogitsLoss."""

    def __call__(self, logit, target, mask=None):
        if mask is None:
            return _bce_mean(logit, target)
        return _bce_mean_masked(logit, target, mask)

    forward = __call__


# ----------------------------------------------------------------------------
# Pure-numpy reference (mirrors torch.nn.BCEWithLogitsLoss, mean reduction).
# ----------------------------------------------------------------------------
def _ref_bce(logit, target, mask=None):
    logit = np.asarray(logit, np.float32)
    target = np.asarray(target, np.float32)
    if mask is not None:
        m = np.asarray(mask, bool)
        m = m.reshape(m.shape + (1,) * (logit.ndim - m.ndim))
        m = np.broadcast_to(m, logit.shape)
        logit = logit[m]
        target = target[m]
    loss = np.maximum(logit, 0.0) - logit * target + np.log1p(np.exp(-np.abs(logit)))
    return np.float32(loss.mean())


if __name__ == "__main__":
    key = jax.random.PRNGKey(0)
    k1, k2, k3 = jax.random.split(key, 3)

    shape = (2, 4, 16, 16)
    logit = jax.random.normal(k1, shape, jnp.float32)
    target = jax.random.uniform(k2, shape, jnp.float32)      # soft targets in [0,1]
    mask = jax.random.uniform(k3, shape) < 0.5                # boolean selection mask

    crit = CrossEntropyLoss()
    loss_all = crit(logit, target)            # unmasked path (no padding needed)
    loss_masked = crit(logit, target, mask)   # masked path (int8 weight stream)

    # Ragged size to exercise the in-kernel tail masking (has_pad path).
    k4, k5 = jax.random.split(k1)
    shape_odd = (3, 5, 14)                    # 210 elements -> padded rows
    logit_odd = jax.random.normal(k4, shape_odd, jnp.float32)
    target_odd = jax.random.uniform(k5, shape_odd, jnp.float32)
    loss_odd = crit(logit_odd, target_odd)

    jax.block_until_ready((loss_all, loss_masked, loss_odd))

    np.testing.assert_allclose(np.asarray(loss_all), _ref_bce(logit, target),
                               rtol=2e-5, atol=2e-5)
    np.testing.assert_allclose(np.asarray(loss_masked), _ref_bce(logit, target, mask),
                               rtol=2e-5, atol=2e-5)
    np.testing.assert_allclose(np.asarray(loss_odd), _ref_bce(logit_odd, target_odd),
                               rtol=2e-5, atol=2e-5)
    print("KERNEL_OK")
</pallas_src>

<mosaic_0001>
module attributes {stable_mosaic.version = 11 : i64} {
  func.func @kernel(%arg0: i32, %arg1: memref<16x128xf32, #tpu.memory_space<vmem>>, %arg2: memref<16x128xf32, #tpu.memory_space<vmem>>, %arg3: memref<1xf32, #tpu.memory_space<smem>>) attributes {dimension_semantics = [#tpu.dimension_semantics<arbitrary>], iteration_bounds = array<i64: 1>, scalar_prefetch = 0 : i64, scratch_operands = 0 : i64, tpu.core_type = #tpu.core_type<tc>, window_params = [{transform_indices = @transform_0, window_bounds = array<i64: 16, 128>}, {transform_indices = @transform_1, window_bounds = array<i64: 16, 128>}, {transform_indices = @transform_2, window_bounds = array<i64: 1>}]} {
    %c0_i32 = arith.constant 0 : i32
    %0 = arith.cmpi eq, %arg0, %c0_i32 : i32
    %1 = arith.extui %0 : i1 to i32
    %c0_i32_0 = arith.constant 0 : i32
    %2 = arith.cmpi ne, %1, %c0_i32_0 : i32
    scf.if %2 {
      %cst_10 = arith.constant 0.000000e+00 : f32
      %c0_11 = arith.constant 0 : index
      %25 = memref.load %arg3[%c0_11] : memref<1xf32, #tpu.memory_space<smem>>
      memref.store %cst_10, %arg3[%c0_11] : memref<1xf32, #tpu.memory_space<smem>>
    } else {
    }
    %c0 = arith.constant 0 : index
    %c0_1 = arith.constant 0 : index
    %3 = vector.load %arg1[%c0, %c0_1] : memref<16x128xf32, #tpu.memory_space<vmem>>, vector<16x128xf32>
    %c0_2 = arith.constant 0 : index
    %c0_3 = arith.constant 0 : index
    %4 = vector.load %arg2[%c0_2, %c0_3] : memref<16x128xf32, #tpu.memory_space<vmem>>, vector<16x128xf32>
    %cst = arith.constant 0.000000e+00 : f32
    %5 = vector.broadcast %cst : f32 to vector<16x128xf32>
    %6 = arith.maximumf %3, %5 : vector<16x128xf32>
    %7 = arith.mulf %3, %4 : vector<16x128xf32>
    %8 = arith.subf %6, %7 : vector<16x128xf32>
    %9 = math.absf %3 : vector<16x128xf32>
    %cst_4 = arith.constant 0.000000e+00 : f32
    %10 = vector.broadcast %cst_4 : f32 to vector<16x128xf32>
    %11 = arith.subf %10, %9 : vector<16x128xf32>
    %12 = math.exp %11 : vector<16x128xf32>
    %13 = math.log1p %12 : vector<16x128xf32>
    %14 = arith.addf %8, %13 : vector<16x128xf32>
    %c0_5 = arith.constant 0 : index
    %15 = memref.load %arg3[%c0_5] : memref<1xf32, #tpu.memory_space<smem>>
    %16 = vector.shape_cast %14 : vector<16x128xf32> to vector<1x16x128xf32>
    %cst_6 = arith.constant dense<0.000000e+00> : vector<1xf32>
    %17 = vector.multi_reduction <add>, %16, %cst_6 [1, 2] : vector<1x16x128xf32> to vector<1xf32>
    %18 = vector.shape_cast %17 : vector<1xf32> to vector<1x1x1xf32>
    %19 = vector.extract %18[0, 0, 0] : f32 from vector<1x1x1xf32>
    %20 = arith.addf %15, %19 : f32
    %c0_7 = arith.constant 0 : index
    %21 = memref.load %arg3[%c0_7] : memref<1xf32, #tpu.memory_space<smem>>
    memref.store %20, %arg3[%c0_7] : memref<1xf32, #tpu.memory_space<smem>>
    %c0_i32_8 = arith.constant 0 : i32
    %22 = arith.cmpi eq, %arg0, %c0_i32_8 : i32
    %23 = arith.extui %22 : i1 to i32
    %c0_i32_9 = arith.constant 0 : i32
    %24 = arith.cmpi ne, %23, %c0_i32_9 : i32
    scf.if %24 {
      %c0_10 = arith.constant 0 : index
      %25 = memref.load %arg3[%c0_10] : memref<1xf32, #tpu.memory_space<smem>>
      %cst_11 = arith.constant 2.048000e+03 : f32
      %26 = arith.divf %25, %cst_11 : f32
      %c0_12 = arith.constant 0 : index
      %27 = memref.load %arg3[%c0_12] : memref<1xf32, #tpu.memory_space<smem>>
      memref.store %26, %arg3[%c0_12] : memref<1xf32, #tpu.memory_space<smem>>
    } else {
    }
    return
  }
  func.func @transform_0(%arg0: i32) -> (i32, i32) {
    %c0_i32 = arith.constant 0 : i32
    %c0_i32_0 = arith.constant 0 : i32
    return %arg0, %c0_i32 : i32, i32
  }
  func.func @transform_1(%arg0: i32) -> (i32, i32) {
    %c0_i32 = arith.constant 0 : i32
    %c0_i32_0 = arith.constant 0 : i32
    return %arg0, %c0_i32 : i32, i32
  }
  func.func @transform_2(%arg0: i32) -> i32 {
    %c0_i32 = arith.constant 0 : i32
    %c0_i32_0 = arith.constant 0 : i32
    return %c0_i32 : i32
  }
}

</mosaic_0001>

<llo_original>
// kernel: _bce_mean.1
$region0: #{_bce_mean.1}
  #allocation0 [shape = 'u32[]', space=smem, size = 0x4, offset = 0x4, fixed_abs, tag = 'smem constant byte address 0x4 - core index']
  #allocation1 [shape = 'u32[144,128]{1,0:T(1,128)}', space=vmem, size = 0x12000, scoped, tag = 'internal scratch']
  %s0 = inlined_call_operand.vmem [shape: f32[16,128], index: 0, kind: input, shape index: {}]
  %s1 = inlined_call_operand.vmem [shape: f32[16,128], index: 1, kind: input, shape index: {}]
  %s2 = inlined_call_operand.hbm [shape: f32[1], index: 2, kind: output, shape index: {}]
  %s3 = sld [smem:[#allocation0]]
  $region26: #{_bce_mean.1} parent=0
    _
  %s5 = ssub.s32 1, %s3
  %s6 = scalar_select 0, %s5, %s3
  $region1: #{_bce_mean.1} parent=0
    #allocation2 [shape = 'u8[512]{0}', space=smem, size = 0x200, scoped, tag = 'output window, operand 0, single buffered']
    #allocation3 [shape = 's32[1]{0}', space=sflag, size = 0x4, scoped, tag = 'scoped memory for _bce_mean.1']
    %7 = vsyncpa [#allocation3], 0
    // Predicated region
    $region2: #{_bce_mean.1} parent=1 // pred_check
      _
    $region3: #{_bce_mean.1} parent=1 // pred_check_branch
      %9 = sbr.rel (0) target = $region5
    $region4: #{_bce_mean.1} parent=1 // pred_region
      _
    $region5: #{_bce_mean.1} parent=1 // pred_fallthru
      _
    // Predicated region
    $region6: #{_bce_mean.1} parent=1 // pred_check
      _
    $region7: #{_bce_mean.1} parent=1 // pred_check_branch
      %11 = sbr.rel (0) target = $region9
    $region8: #{_bce_mean.1} parent=1 // pred_region
      _
    $region9: #{_bce_mean.1} parent=1 // pred_fallthru
      _
    %p12 = scmp.eq.s32.totalorder 0, 0
    // Predicated region
    $region10: #{_bce_mean.1} parent=1 // pred_check
      %p13 = pneg %p12
    $region11: #{_bce_mean.1} parent=1 // pred_check_branch
      %15 = sbr.rel (%p13) target = $region13
    $region12: #{_bce_mean.1} parent=1 // pred_region
      %s16 = scalar_lea.smem [#allocation2], 0
      %17 = sst [smem:[%s16]] 0.0
    $region13: #{_bce_mean.1} parent=1 // pred_fallthru
      _
    %v18 = vld [vmem:[%s0] sm:$0xff]
    %v19 = vld [vmem:[%s0 + $0x8] sm:$0xff]
    %v20 = vld [vmem:[%s1] sm:$0xff]
    %v21 = vld [vmem:[%s1 + $0x8] sm:$0xff]
    %v22 = vmax.f32 %v18, 0.0
    %v23 = vmax.f32 %v19, 0.0
    %v24 = vmul.f32 %v18, %v20
    %v25 = vmul.f32 %v19, %v21
    %v26 = vsub.f32 %v22, %v24
    %v27 = vsub.f32 %v23, %v25
    %v28 = vand.u32 2147483647, %v18
    %v29 = vand.u32 2147483647, %v19
    %v30 = vsub.f32 0.0, %v28
    %v31 = vsub.f32 0.0, %v29
    %v32 = vmul.f32 %v30, 1.442695
    %v33 = vpow.pop %v32
    %v34 = vmul.f32 %v31, 1.442695
    %v35 = vpow.pop %v34
    %v36 = vadd.f32 %v33, 1.0
    %v37 = vlog2.pop %v36
    %v38 = vmul.f32 %v37, 0.6931472
    %v39 = vmul.f32 -0.5, %v33
    %v40 = vadd.f32 %v39, 1.0
    %v41 = vmul.f32 %v40, %v33
    %v42 = vand.u32 2147483647, %v33
    %vm43 = vcmp.lt.f32.partialorder %v42, 0.0004427343
    %v44 = vsel %vm43, %v41, %v38
    %v45 = vadd.f32 %v35, 1.0
    %v46 = vlog2.pop %v45
    %v47 = vmul.f32 %v46, 0.6931472
    %v48 = vmul.f32 -0.5, %v35
    %v49 = vadd.f32 %v48, 1.0
    %v50 = vmul.f32 %v49, %v35
    %v51 = vand.u32 2147483647, %v35
    %vm52 = vcmp.lt.f32.partialorder %v51, 0.0004427343
    %v53 = vsel %vm52, %v50, %v47
    %v54 = vadd.f32 %v26, %v44
    %v55 = vadd.f32 %v27, %v53
    %s56 = sld [smem:[#allocation2]]
    %v57 = vadd.f32 %v54, %v55
    %58 = vadd.xlane.f32.xlu0 %v57
    %v59 = vpop.xlane.xlu0 %58
    %v60 = vrot.slane %v59, 4
    %v61 = vadd.f32 %v59, %v60
    %v62 = vrot.slane %v61, 2
    %v63 = vadd.f32 %v61, %v62
    %v64 = vrot.slane %v63, 1
    %v65 = vadd.f32 %v63, %v64
    %s66 = vtos %v65
    %s67 = sadd.f32 %s56, %s66
    %s68 = scalar_lea.smem [#allocation2], 0
    %69 = sst [smem:[%s68]] %s67
    // Predicated region
    $region14: #{_bce_mean.1} parent=1 // pred_check
      %p70 = pneg %p12
    $region15: #{_bce_mean.1} parent=1 // pred_check_branch
      %72 = sbr.rel (%p70) target = $region17
    $region16: #{_bce_mean.1} parent=1 // pred_region
      %s73 = sld [smem:[#allocation2]]
      %v74 = vrcp.pop 2048.0
      %s75 = vtos %v74
      %s76 = smul.f32 %s73, %s75
      %77 = sst [smem:[%s68]] %s76
    $region17: #{_bce_mean.1} parent=1 // pred_fallthru
      _
    // Predicated region
    $region18: #{_bce_mean.1} parent=1 // pred_check
      _
    $region19: #{_bce_mean.1} parent=1 // pred_check_branch
      %79 = sbr.rel (0) target = $region21
    $region20: #{_bce_mean.1} parent=1 // pred_region
      %s81 = ssub.s32 16, 16
      %82 = vsyncadd [#allocation3], %s81
      %85 = dma.smem_to_hbm [#allocation2], 16, %s2, [#allocation3]
    $region21: #{_bce_mean.1} parent=1 // pred_fallthru
      _
    // Predicated region
    $region22: #{_bce_mean.1} parent=1 // pred_check
      _
    $region23: #{_bce_mean.1} parent=1 // pred_check_branch
      %87 = sbr.rel (0) target = $region25
    $region24: #{_bce_mean.1} parent=1 // pred_region
      %88 = dma.done [#allocation3], 16
    $region25: #{_bce_mean.1} parent=1 // pred_fallthru
      _
    %89 = sfence
    %90 = vsyncpa [#allocation3], 1

</llo_original>
